<compile_context>
chip_gen: v5e
topology: v5e:2x2
jax: 0.10.0
libtpu: 0.0.40
codegen_flags: <defaults>
</compile_context>

<pallas_src>
import functools

import jax
import jax.numpy as jnp
from jax.experimental import pallas as pl
from jax.experimental.pallas import tpu as pltpu

LANE = 128       # TPU lane width; hidden/out feature axes are padded to this.
BATCH_TILE = 256 # batch rows per grid step when the batch is large.


def mlp_kernel(x_ref, w_ref, b_ref, o_ref):
    """Fused MLP forward for one batch tile.

    x_ref : (bm, in_n)        f32
    w_ref : (2, 128, 128)     f32  -- [0]=W1^T padded, [1]=W2^T padded
    b_ref : (2, 128)          f32  -- [0]=b1 padded,   [1]=b2 padded
    o_ref : (bm, out_n)       f32
    """
    in_n = x_ref.shape[-1]
    out_n = o_ref.shape[-1]

    x = x_ref[...]                                            # (bm, in_n)
    w = w_ref[...]                                            # (2, 128, 128)
    b = b_ref[...]                                            # (2, 128)

    # Layer 1: lane-dense hidden activations (padded units are tanh(0)=0).
    h = jnp.dot(x, w[0, :in_n, :], preferred_element_type=jnp.float32)
    h = jnp.tanh(h + b[0:1, :])                               # (bm, 128)

    # Layer 2: padded W2 rows/cols are zero, so padding is inert.
    y = jnp.dot(h, w[1], preferred_element_type=jnp.float32)
    y = jnp.tanh(y + b[1:2, :])                               # (bm, 128)

    # Single (masked) store of the real out_n lanes — no wrapper slice needed.
    o_ref[...] = y[:, :out_n].astype(o_ref.dtype)


def prepare_params(w1, b1, w2, b2, lane=LANE):
    """One-time parameter prep — NOT part of the per-call forward path.

    Converts PyTorch nn.Linear layout (out, in) into the kernel layout:
      * transpose once to (in, out),
      * zero-pad feature axes to 128 lanes (semantics-preserving: padded
        hidden units are tanh(0)=0 and padded W2 rows/cols contribute 0),
      * stack W1/W2 into one (2,128,128) array and b1/b2 into one (2,128)
        array so the kernel has 3 input DMAs instead of 5.
    """
    out_n, in_n = w1.shape
    assert in_n <= lane and out_n <= lane, "single-tile prep; block features otherwise"

    w_packed = jnp.zeros((2, lane, lane), jnp.float32)
    w_packed = w_packed.at[0, :in_n, :out_n].set(jnp.asarray(w1, jnp.float32).T)
    w_packed = w_packed.at[1, :out_n, :out_n].set(jnp.asarray(w2, jnp.float32).T)

    b_packed = jnp.zeros((2, lane), jnp.float32)
    b_packed = b_packed.at[0, :out_n].set(jnp.asarray(b1, jnp.float32))
    b_packed = b_packed.at[1, :out_n].set(jnp.asarray(b2, jnp.float32))
    return w_packed, b_packed, out_n


@functools.partial(jax.jit, static_argnames=("out_n",))
def mlp_forward(x, w_packed, b_packed, *, out_n):
    """y = tanh(tanh(x @ W1^T + b1) @ W2^T + b2), using prepared params.

    Per-call path: exactly one pallas_call, no transposes, no casts, no slice.
    """
    B, in_n = x.shape
    lane = w_packed.shape[-1]

    # Batch tiling: one block for small B, 256-row tiles (MXU-aligned on
    # v6e/v7x, fine on v5e) for large B.  Weights/biases stay resident via
    # constant index_maps; the batch axis is "parallel" for megacore (v7x).
    bm = BATCH_TILE if (B % BATCH_TILE == 0) else B
    grid = (B // bm,)

    return pl.pallas_call(
        mlp_kernel,
        out_shape=jax.ShapeDtypeStruct((B, out_n), jnp.float32),
        grid=grid,
        in_specs=[
            pl.BlockSpec((bm, in_n), lambda i: (i, 0)),
            pl.BlockSpec((2, lane, lane), lambda i: (0, 0, 0)),
            pl.BlockSpec((2, lane), lambda i: (0, 0)),
        ],
        out_specs=pl.BlockSpec((bm, out_n), lambda i: (i, 0)),
        compiler_params=pltpu.CompilerParams(
            dimension_semantics=("parallel",)),
    )(x, w_packed, b_packed)


def _init_linear(key, out_features, in_features):
    # Deterministic init mimicking nn.Linear's uniform(-1/sqrt(in), 1/sqrt(in)).
    kw, kb = jax.random.split(key)
    bound = 1.0 / jnp.sqrt(jnp.float32(in_features))
    w = jax.random.uniform(kw, (out_features, in_features), jnp.float32,
                           minval=-bound, maxval=bound)
    b = jax.random.uniform(kb, (out_features,), jnp.float32,
                           minval=-bound, maxval=bound)
    return w, b


if __name__ == "__main__":
    input_neurons = 32
    output_neurons = 16
    batch = 8

    key = jax.random.PRNGKey(0)
    kx, k1, k2 = jax.random.split(key, 3)

    x = jax.random.normal(kx, (batch, input_neurons), jnp.float32)
    w1, b1 = _init_linear(k1, output_neurons, input_neurons)   # linear1
    w2, b2 = _init_linear(k2, output_neurons, output_neurons)  # linear2

    # One-time prep (transpose + pad + stack) — outside the forward path.
    w_packed, b_packed, out_n = prepare_params(w1, b1, w2, b2)

    y = mlp_forward(x, w_packed, b_packed, out_n=out_n)
    jax.block_until_ready(y)

    # Pure-JAX reference check of the fused kernel (f32 end to end).
    ref = jnp.tanh(jnp.tanh(x @ w1.T + b1) @ w2.T + b2)
    assert y.shape == (batch, output_neurons)
    assert jnp.allclose(y, ref, atol=1e-5, rtol=1e-5)

    print("KERNEL_OK")
</pallas_src>

<mosaic_0001>
module attributes {stable_mosaic.version = 11 : i64} {
  func.func @mlp_kernel(%arg0: i32, %arg1: memref<8x32xf32, #tpu.memory_space<vmem>>, %arg2: memref<2x128x128xf32, #tpu.memory_space<vmem>>, %arg3: memref<2x128xf32, #tpu.memory_space<vmem>>, %arg4: memref<8x16xf32, #tpu.memory_space<vmem>>) attributes {dimension_semantics = [#tpu.dimension_semantics<parallel>], iteration_bounds = array<i64: 1>, scalar_prefetch = 0 : i64, scratch_operands = 0 : i64, tpu.core_type = #tpu.core_type<tc>, window_params = [{transform_indices = @transform_0, window_bounds = array<i64: 8, 32>}, {pipeline_mode = #tpu.pipeline_mode<synchronous>, transform_indices = @transform_1, window_bounds = array<i64: 2, 128, 128>}, {pipeline_mode = #tpu.pipeline_mode<synchronous>, transform_indices = @transform_2, window_bounds = array<i64: 2, 128>}, {transform_indices = @transform_3, window_bounds = array<i64: 8, 16>}]} {
    %c0 = arith.constant 0 : index
    %c0_0 = arith.constant 0 : index
    %0 = vector.load %arg1[%c0, %c0_0] : memref<8x32xf32, #tpu.memory_space<vmem>>, vector<8x32xf32>
    %c0_1 = arith.constant 0 : index
    %c0_2 = arith.constant 0 : index
    %c0_3 = arith.constant 0 : index
    %1 = vector.load %arg2[%c0_1, %c0_2, %c0_3] : memref<2x128x128xf32, #tpu.memory_space<vmem>>, vector<2x128x128xf32>
    %c0_4 = arith.constant 0 : index
    %c0_5 = arith.constant 0 : index
    %2 = vector.load %arg3[%c0_4, %c0_5] : memref<2x128xf32, #tpu.memory_space<vmem>>, vector<2x128xf32>
    %3 = vector.extract_strided_slice %1 {offsets = [0, 0, 0], sizes = [1, 32, 128], strides = [1, 1, 1]} : vector<2x128x128xf32> to vector<1x32x128xf32>
    %4 = vector.shape_cast %3 : vector<1x32x128xf32> to vector<32x128xf32>
    %cst = arith.constant dense<0.000000e+00> : vector<8x128xf32>
    %5 = tpu.matmul %0, %4, %cst {dimension_numbers = #tpu.dot_dimension_numbers<[1], [0], [0], [1], [0, 0, 1, 1], [], []>} : vector<8x32xf32>, vector<32x128xf32>, vector<8x128xf32> -> vector<8x128xf32>
    %6 = vector.extract_strided_slice %2 {offsets = [0, 0], sizes = [1, 128], strides = [1, 1]} : vector<2x128xf32> to vector<1x128xf32>
    %7 = vector.broadcast %6 : vector<1x128xf32> to vector<8x128xf32>
    %8 = arith.addf %5, %7 : vector<8x128xf32>
    %9 = math.tanh %8 : vector<8x128xf32>
    %10 = vector.extract_strided_slice %1 {offsets = [1, 0, 0], sizes = [1, 128, 128], strides = [1, 1, 1]} : vector<2x128x128xf32> to vector<1x128x128xf32>
    %11 = vector.shape_cast %10 : vector<1x128x128xf32> to vector<128x128xf32>
    %cst_6 = arith.constant dense<0.000000e+00> : vector<8x128xf32>
    %12 = tpu.matmul %9, %11, %cst_6 {dimension_numbers = #tpu.dot_dimension_numbers<[1], [0], [0], [1], [0, 0, 1, 1], [], []>} : vector<8x128xf32>, vector<128x128xf32>, vector<8x128xf32> -> vector<8x128xf32>
    %13 = vector.extract_strided_slice %2 {offsets = [1, 0], sizes = [1, 128], strides = [1, 1]} : vector<2x128xf32> to vector<1x128xf32>
    %14 = vector.broadcast %13 : vector<1x128xf32> to vector<8x128xf32>
    %15 = arith.addf %12, %14 : vector<8x128xf32>
    %16 = math.tanh %15 : vector<8x128xf32>
    %17 = vector.extract_strided_slice %16 {offsets = [0, 0], sizes = [8, 16], strides = [1, 1]} : vector<8x128xf32> to vector<8x16xf32>
    %c0_7 = arith.constant 0 : index
    %c0_8 = arith.constant 0 : index
    %18 = vector.load %arg4[%c0_7, %c0_8] : memref<8x16xf32, #tpu.memory_space<vmem>>, vector<8x16xf32>
    tpu.vector_store %arg4[%c0_7, %c0_8], %17 {strides = array<i32>} : memref<8x16xf32, #tpu.memory_space<vmem>>, vector<8x16xf32>,
    return
  }
  func.func @transform_0(%arg0: i32) -> (i32, i32) {
    %c0_i32 = arith.constant 0 : i32
    %c0_i32_0 = arith.constant 0 : i32
    return %arg0, %c0_i32 : i32, i32
  }
  func.func @transform_1(%arg0: i32) -> (i32, i32, i32) {
    %c0_i32 = arith.constant 0 : i32
    %c0_i32_0 = arith.constant 0 : i32
    %c0_i32_1 = arith.constant 0 : i32
    %c0_i32_2 = arith.constant 0 : i32
    return %c0_i32, %c0_i32_0, %c0_i32_1 : i32, i32, i32
  }
  func.func @transform_2(%arg0: i32) -> (i32, i32) {
    %c0_i32 = arith.constant 0 : i32
    %c0_i32_0 = arith.constant 0 : i32
    %c0_i32_1 = arith.constant 0 : i32
    return %c0_i32, %c0_i32_0 : i32, i32
  }
  func.func @transform_3(%arg0: i32) -> (i32, i32) {
    %c0_i32 = arith.constant 0 : i32
    %c0_i32_0 = arith.constant 0 : i32
    return %arg0, %c0_i32 : i32, i32
  }
}

</mosaic_0001>

<llo_original>
// kernel: mlp_forward.1
$region0: #{mlp_forward.1}
  #allocation0 [shape = 'u32[]', space=smem, size = 0x4, offset = 0x4, fixed_abs, tag = 'smem constant byte address 0x4 - core index']
  #allocation1 [shape = 'u32[72,128]{1,0:T(1,128)}', space=vmem, size = 0x9000, scoped, tag = 'internal scratch']
  %s0 = inlined_call_operand.hbm [shape: f32[8,32], index: 0, kind: input, shape index: {}]
  %s1 = inlined_call_operand.hbm [shape: f32[2,128,128], index: 1, kind: input, shape index: {}]
  %s2 = inlined_call_operand.hbm [shape: f32[2,128], index: 2, kind: input, shape index: {}]
  %s3 = inlined_call_operand.hbm [shape: f32[8,16], index: 3, kind: output, shape index: {}]
  %s4 = sld [smem:[#allocation0]]
  $region34: #{mlp_forward.1} parent=0
    _
  %s6 = ssub.s32 1, %s4
  %s7 = scalar_select 0, %s6, %s4
  $region1: #{mlp_forward.1} parent=0
    #allocation2 [shape = 'u8[4096]{0}', space=vmem, size = 0x1000, scoped, tag = 'input window, operand 0, single buffered']
    #allocation3 [shape = 's32[1]{0}', space=sflag, size = 0x4, scoped, tag = 'scoped memory for mlp_forward.1']
    #allocation4 [shape = 's32[1]{0}', space=sflag, size = 0x4, scoped, tag = 'scoped memory for mlp_forward.1']
    #allocation5 [shape = 'u8[131072]{0}', space=vmem, size = 0x20000, scoped, tag = 'input window, operand 1, single buffered']
    #allocation6 [shape = 's32[1]{0}', space=sflag, size = 0x4, scoped, tag = 'scoped memory for mlp_forward.1']
    #allocation7 [shape = 'u8[1024]{0}', space=vmem, size = 0x400, scoped, tag = 'input window, operand 2, single buffered']
    #allocation8 [shape = 'u8[4096]{0}', space=vmem, size = 0x1000, scoped, tag = 'output window, operand 0, single buffered']
    %8 = vsyncpa [#allocation3], 0
    %9 = vsyncpa [#allocation6], 0
    %10 = vsyncpa [#allocation4], 0
    // Predicated region
    $region2: #{mlp_forward.1} parent=1 // pred_check
      _
    $region3: #{mlp_forward.1} parent=1 // pred_check_branch
      %12 = sbr.rel (0) target = $region5
    $region4: #{mlp_forward.1} parent=1 // pred_region
      %14 = vsyncadd [#allocation3], 0
      %s16 = sshll.u32 %s0, 4
      %s17 = int_to_ptr.hbm [resolvable:$true] %s16
      %s18 = sshll.u32 [#allocation2], 4
      %s19 = int_to_ptr.vmem [resolvable:$true] %s18
      %21 = dma.hbm_to_vmem [thread:$0]  %s17, 128, %s19, [#allocation3]
    $region5: #{mlp_forward.1} parent=1 // pred_fallthru
      _
    // Predicated region
    $region6: #{mlp_forward.1} parent=1 // pred_check
      _
    $region7: #{mlp_forward.1} parent=1 // pred_check_branch
      %23 = sbr.rel (0) target = $region9
    $region8: #{mlp_forward.1} parent=1 // pred_region
      %25 = vsyncadd [#allocation6], 0
      %s26 = sshll.u32 %s1, 4
      %s27 = int_to_ptr.hbm [resolvable:$true] %s26
      %s28 = sshll.u32 [#allocation5], 4
      %s29 = int_to_ptr.vmem [resolvable:$true] %s28
      %34 = dma.hbm_to_vmem [thread:$0]  %s27, 4096, %s29, [#allocation6], 128, 128, 8
    $region9: #{mlp_forward.1} parent=1 // pred_fallthru
      _
    // Predicated region
    $region10: #{mlp_forward.1} parent=1 // pred_check
      _
    $region11: #{mlp_forward.1} parent=1 // pred_check_branch
      %36 = sbr.rel (0) target = $region13
    $region12: #{mlp_forward.1} parent=1 // pred_region
      %38 = vsyncadd [#allocation6], 0
      %s40 = sshll.u32 %s2, 4
      %s41 = int_to_ptr.hbm [resolvable:$true] %s40
      %s42 = sshll.u32 [#allocation7], 4
      %s43 = int_to_ptr.vmem [resolvable:$true] %s42
      %45 = dma.hbm_to_vmem [thread:$0]  %s41, 32, %s43, [#allocation6]
    $region13: #{mlp_forward.1} parent=1 // pred_fallthru
      _
    // Predicated region
    $region14: #{mlp_forward.1} parent=1 // pred_check
      _
    $region15: #{mlp_forward.1} parent=1 // pred_check_branch
      %47 = sbr.rel (0) target = $region17
    $region16: #{mlp_forward.1} parent=1 // pred_region
      %49 = dma.done [#allocation3], 128
    $region17: #{mlp_forward.1} parent=1 // pred_fallthru
      _
    // Predicated region
    $region18: #{mlp_forward.1} parent=1 // pred_check
      _
    $region19: #{mlp_forward.1} parent=1 // pred_check_branch
      %51 = sbr.rel (0) target = $region21
    $region20: #{mlp_forward.1} parent=1 // pred_region
      %53 = dma.done [#allocation6], 4096
    $region21: #{mlp_forward.1} parent=1 // pred_fallthru
      _
    // Predicated region
    $region22: #{mlp_forward.1} parent=1 // pred_check
      _
    $region23: #{mlp_forward.1} parent=1 // pred_check_branch
      %55 = sbr.rel (0) target = $region25
    $region24: #{mlp_forward.1} parent=1 // pred_region
      %57 = dma.done [#allocation6], 32
    $region25: #{mlp_forward.1} parent=1 // pred_fallthru
      _
    %v58 = vld [vmem:[#allocation2] sm:$0xff]
    %v59 = vld [vmem:[#allocation5] sm:$0xff]
    %v60 = vld [vmem:[#allocation5 + $0x8] sm:$0xff]
    %v61 = vld [vmem:[#allocation5 + $0x10] sm:$0xff]
    %v62 = vld [vmem:[#allocation5 + $0x18] sm:$0xff]
    %v63 = vld [vmem:[#allocation5 + $0x80] sm:$0xff]
    %v64 = vld [vmem:[#allocation5 + $0x88] sm:$0xff]
    %v65 = vld [vmem:[#allocation5 + $0x90] sm:$0xff]
    %v66 = vld [vmem:[#allocation5 + $0x98] sm:$0xff]
    %v67 = vld [vmem:[#allocation5 + $0xa0] sm:$0xff]
    %v68 = vld [vmem:[#allocation5 + $0xa8] sm:$0xff]
    %v69 = vld [vmem:[#allocation5 + $0xb0] sm:$0xff]
    %v70 = vld [vmem:[#allocation5 + $0xb8] sm:$0xff]
    %v71 = vld [vmem:[#allocation5 + $0xc0] sm:$0xff]
    %v72 = vld [vmem:[#allocation5 + $0xc8] sm:$0xff]
    %v73 = vld [vmem:[#allocation5 + $0xd0] sm:$0xff]
    %v74 = vld [vmem:[#allocation5 + $0xd8] sm:$0xff]
    %v75 = vld [vmem:[#allocation5 + $0xe0] sm:$0xff]
    %v76 = vld [vmem:[#allocation5 + $0xe8] sm:$0xff]
    %v77 = vld [vmem:[#allocation5 + $0xf0] sm:$0xff]
    %v78 = vld [vmem:[#allocation5 + $0xf8] sm:$0xff]
    %v79 = vld [vmem:[#allocation7] sm:$0x3]
    %v80 = vperm.slane %v79, 0
    %vm81 = vcmask 261120
    %v83 = vsel %vm81, %v58, 0
    %85 = vmatpush.msra.mxu0 0.0
    %86 = vmatpush.msra.mxu0 0.0
    %87 = vmatpush.msra.mxu0 0.0
    %88 = vmatpush.msra.mxu0 0.0
    %89 = vmatpush.msra.mxu0 0.0
    %90 = vmatpush.msra.mxu0 0.0
    %91 = vmatpush.msra.mxu0 0.0
    %92 = vmatpush.msra.mxu0 0.0
    %93 = vmatpush.msra.mxu0 0.0
    %94 = vmatpush.msra.mxu0 0.0
    %95 = vmatpush.msra.mxu0 0.0
    %96 = vmatpush.msra.mxu0 0.0
    %97 = vmatpush.msra.mxu0 %v62
    %98 = vmatpush.msra.mxu0 %v61
    %99 = vmatpush.msra.mxu0 %v60
    %100 = vmatpush.msra.mxu0 %v59
    %101 = vmatmul.f32.gmra.mxu0 %v83
    %v102 = vpop.f32.mrf.mxu0
    %v103 = vadd.f32 %v80, %v102
    %104 = vdwg.mxu0
    %v105 = vtanh.pop %v103
    %v106 = vperm.slane %v79, 1
    %107 = vmatpush.msra.mxu0 %v78
    %108 = vmatpush.msra.mxu0 %v77
    %109 = vmatpush.msra.mxu0 %v76
    %110 = vmatpush.msra.mxu0 %v75
    %111 = vmatpush.msra.mxu0 %v74
    %112 = vmatpush.msra.mxu0 %v73
    %113 = vmatpush.msra.mxu0 %v72
    %114 = vmatpush.msra.mxu0 %v71
    %115 = vmatpush.msra.mxu0 %v70
    %116 = vmatpush.msra.mxu0 %v69
    %117 = vmatpush.msra.mxu0 %v68
    %118 = vmatpush.msra.mxu0 %v67
    %119 = vmatpush.msra.mxu0 %v66
    %120 = vmatpush.msra.mxu0 %v65
    %121 = vmatpush.msra.mxu0 %v64
    %122 = vmatpush.msra.mxu0 %v63
    %123 = vmatmul.f32.gmra.mxu0 %v105
    %v124 = vpop.f32.mrf.mxu0
    %v125 = vadd.f32 %v106, %v124
    %126 = vdwg.mxu0
    %v127 = vtanh.pop %v125
    %vm128 = vcmask 130048
    %129 = vst.msk [vmem:[#allocation8] sm:$0xff] %vm128, %v127
    // Predicated region
    $region26: #{mlp_forward.1} parent=1 // pred_check
      _
    $region27: #{mlp_forward.1} parent=1 // pred_check_branch
      %131 = sbr.rel (0) target = $region29
    $region28: #{mlp_forward.1} parent=1 // pred_region
      %133 = vsyncadd [#allocation4], 0
      %s135 = sshll.u32 [#allocation8], 4
      %s136 = int_to_ptr.vmem [resolvable:$true] %s135
      %s137 = sshll.u32 %s3, 4
      %s138 = int_to_ptr.hbm [resolvable:$true] %s137
      %140 = dma.vmem_to_hbm [thread:$0]  %s136, 128, %s138, [#allocation4]
    $region29: #{mlp_forward.1} parent=1 // pred_fallthru
      _
    // Predicated region
    $region30: #{mlp_forward.1} parent=1 // pred_check
      _
    $region31: #{mlp_forward.1} parent=1 // pred_check_branch
      %142 = sbr.rel (0) target = $region33
    $region32: #{mlp_forward.1} parent=1 // pred_region
      %144 = dma.done [#allocation4], 128
    $region33: #{mlp_forward.1} parent=1 // pred_fallthru
      _
    %145 = vsyncpa [#allocation3], 1
    %146 = vsyncpa [#allocation6], 1
    %147 = vsyncpa [#allocation4], 1

</llo_original>
